<compile_context>
chip_gen: v5e
topology: v5e:2x2
jax: 0.10.0
libtpu: 0.0.40
codegen_flags: <defaults>
</compile_context>

<pallas_src>
import functools

import jax
import jax.numpy as jnp
from jax import lax
from jax.experimental import pallas as pl
from jax.experimental.pallas import tpu as pltpu


def _layernorm_kernel(x_ref, g_ref, o_ref, *, eps, low_precision_epilogue):
    x = x_ref[...].astype(jnp.float32)                     # (C, TS)
    inv_c = 1.0 / x.shape[0]
    mean = jnp.sum(x, axis=0, keepdims=True) * inv_c       # (1, TS)
    ex2 = jnp.sum(x * x, axis=0, keepdims=True) * inv_c    # (1, TS)
    var = jnp.maximum(ex2 - mean * mean, 0.0)               # unbiased=False
    inv_std = lax.rsqrt(var + eps)                           # (1, TS), f32
    if low_precision_epilogue:
        # bf16 finalize: halves per-element VALU work and the f32 temp
        # footprint on v6e/v7x (stats already accumulated in f32 above).
        xc = (x - mean).astype(o_ref.dtype)
        o_ref[...] = xc * inv_std.astype(o_ref.dtype) * g_ref[...].astype(o_ref.dtype)
    else:
        o_ref[...] = ((x - mean) * inv_std * g_ref[...]).astype(o_ref.dtype)


def _vmem_capacity_bytes():
    try:
        return int(pltpu.get_tpu_info().vmem_capacity_bytes)
    except Exception:
        return 64 << 20   # safe minimum across v5e / v6e / v7x


def _choose_tile_s(S, max_ts, min_tiles):
    """Lane-dim (S) tile: the full S extent, or a multiple of 128, preferring a
    multiple of 128 that divides S so the last tile is not ragged/masked."""
    if S <= 128:
        return int(S)                                   # full extent is always legal
    target = min(max_ts, -(-S // min_tiles))            # cdiv(S, min_tiles)
    target = max(128, min(target, S))
    if target >= S and min_tiles <= 1:
        return int(S)
    best = 0
    t = (target // 128) * 128
    while t >= 128:                                     # prefer a divisor of S
        if S % t == 0:
            best = t
            break
        t -= 128
    if best == 0:
        best = max(128, (target // 128) * 128)
    return int(best)


def layernorm(x, gamma, *, eps=1e-5, tile_bytes=4 << 20):
    """x: (B, C, D, H, W); gamma reshapeable to (C,) (PyTorch (1, C, 1, 1, 1))."""
    B, C, D, H, W = x.shape
    S = D * H * W
    xs = x.reshape(B, C, S)
    g = jnp.asarray(gamma, jnp.float32).reshape(C, 1)   # pre-cast gamma once

    itemsize = xs.dtype.itemsize
    # Leave ~25% of physical VMEM for Mosaic internal scratch / semaphores:
    # ~48 MiB usable on v7x, ~96 MiB on v5e/v6e (128 MiB chips).
    vmem_budget = (_vmem_capacity_bytes() * 3) // 4
    # Per lane of the S tile: double-buffered in + out blocks in the input
    # dtype plus ~3 (C, TS) f32 intermediates (x32, stats path, scaled output).
    bytes_per_lane = C * (4 * itemsize + 3 * 4)
    ts_cap_budget = (vmem_budget - (2 << 20)) // bytes_per_lane
    ts_cap_target = max(tile_bytes // (C * itemsize), 1)
    ts_cap = int(min(ts_cap_budget, ts_cap_target))
    if ts_cap_budget < min(S, 128):
        # TODO(synk): add a C-tiling / two-stage reduction fallback for very large C.
        raise ValueError(
            f"C={C} is too large for a single (C, {min(S, 128)}) f32 tile in VMEM")

    min_s_tiles = 2 if B < 2 else 1      # keep both v7x TensorCores busy
    TS = _choose_tile_s(S, max(ts_cap, min(S, 128)), min_s_tiles)
    n_s = pl.cdiv(S, TS)

    working_set = bytes_per_lane * TS + 2 * C * 4 + (2 << 20)
    vmem_limit = int(min(max(working_set, 32 << 20), vmem_budget))

    low_precision_epilogue = xs.dtype == jnp.bfloat16

    out = pl.pallas_call(
        functools.partial(_layernorm_kernel, eps=eps,
                          low_precision_epilogue=low_precision_epilogue),
        out_shape=jax.ShapeDtypeStruct((B, C, S), x.dtype),
        grid=(B, n_s),
        in_specs=[
            pl.BlockSpec((None, C, TS), lambda b, s: (b, 0, s)),  # B squeezed
            pl.BlockSpec((C, 1), lambda b, s: (0, 0)),            # gamma, f32
        ],
        out_specs=pl.BlockSpec((None, C, TS), lambda b, s: (b, 0, s)),
        compiler_params=pltpu.CompilerParams(
            dimension_semantics=("parallel", "parallel"),
            vmem_limit_bytes=vmem_limit,
        ),
    )(xs, g)
    return out.reshape(B, C, D, H, W)


# ----------------------------------------------------------------------------
# Pure-JAX reference (mirrors the PyTorch forward exactly).
# ----------------------------------------------------------------------------
def ref_layernorm(x, gamma, eps=1e-5):
    x32 = x.astype(jnp.float32)
    mean = jnp.mean(x32, axis=1, keepdims=True)
    var = jnp.mean((x32 - mean) ** 2, axis=1, keepdims=True)
    y = (x32 - mean) / jnp.sqrt(var + eps) * jnp.asarray(gamma, jnp.float32)
    return y.astype(x.dtype)


if __name__ == "__main__":
    B, C, D, H, W = 2, 32, 4, 16, 16
    key = jax.random.PRNGKey(0)
    kx, kg = jax.random.split(key)
    x = jax.random.normal(kx, (B, C, D, H, W), jnp.float32) * 3.0 + 1.5
    gamma = 1.0 + 0.1 * jax.random.normal(kg, (1, C, 1, 1, 1), jnp.float32)

    ref = ref_layernorm(x, gamma)

    # Single-tile-per-batch path (S = D*H*W = 1024 fits one block).
    out = jax.block_until_ready(jax.jit(layernorm)(x, gamma))
    assert out.shape == x.shape
    err = float(jnp.max(jnp.abs(out - ref)))
    assert err < 1e-4, f"single-tile mismatch: max abs err = {err}"

    # Tiled path: small tile target -> divisor-preferring tile picks TS=256
    # over S=1024 (4 grid steps, no ragged tail).
    out_t = jax.block_until_ready(
        jax.jit(functools.partial(layernorm, tile_bytes=384 * C * 4))(x, gamma))
    err_t = float(jnp.max(jnp.abs(out_t - ref)))
    assert err_t < 1e-4, f"tiled mismatch: max abs err = {err_t}"

    # B == 1: wrapper guarantees >= 2 grid steps (v7x megacore occupancy).
    x1 = x[:1]
    ref1 = ref_layernorm(x1, gamma)
    out1 = jax.block_until_ready(jax.jit(layernorm)(x1, gamma))
    err1 = float(jnp.max(jnp.abs(out1 - ref1)))
    assert err1 < 1e-4, f"B=1 mismatch: max abs err = {err1}"

    # bf16 path exercises the low-precision epilogue (stats still f32).
    xb = x.astype(jnp.bfloat16)
    refb = ref_layernorm(xb, gamma).astype(jnp.float32)
    outb = jax.block_until_ready(jax.jit(layernorm)(xb, gamma)).astype(jnp.float32)
    errb = float(jnp.max(jnp.abs(outb - refb)))
    assert errb < 2.5e-1, f"bf16 mismatch: max abs err = {errb}"

    print("KERNEL_OK")
</pallas_src>

<mosaic_0001>
module attributes {stable_mosaic.version = 11 : i64} {
  func.func @_layernorm_kernel(%arg0: i32, %arg1: i32, %arg2: memref<1x32x1024xf32, #tpu.memory_space<vmem>>, %arg3: memref<32x1xf32, #tpu.memory_space<vmem>>, %arg4: memref<1x32x1024xf32, #tpu.memory_space<vmem>>) attributes {dimension_semantics = [#tpu.dimension_semantics<parallel>, #tpu.dimension_semantics<parallel>], iteration_bounds = array<i64: 2, 1>, scalar_prefetch = 0 : i64, scratch_operands = 0 : i64, tpu.core_type = #tpu.core_type<tc>, window_params = [{transform_indices = @transform_0, window_bounds = array<i64: 1, 32, 1024>}, {pipeline_mode = #tpu.pipeline_mode<synchronous>, transform_indices = @transform_1, window_bounds = array<i64: 32, 1>}, {transform_indices = @transform_2, window_bounds = array<i64: 1, 32, 1024>}]} {
    %c0 = arith.constant 0 : index
    %c0_0 = arith.constant 0 : index
    %c0_1 = arith.constant 0 : index
    %0 = vector.load %arg2[%c0, %c0_0, %c0_1] : memref<1x32x1024xf32, #tpu.memory_space<vmem>>, vector<1x32x1024xf32>
    %1 = vector.shape_cast %0 : vector<1x32x1024xf32> to vector<32x1024xf32>
    %cst = arith.constant dense<0.000000e+00> : vector<1024xf32>
    %2 = vector.multi_reduction <add>, %1, %cst [0] : vector<32x1024xf32> to vector<1024xf32>
    %3 = vector.shape_cast %2 : vector<1024xf32> to vector<1x1024xf32>
    %cst_2 = arith.constant 3.125000e-02 : f32
    %4 = vector.broadcast %cst_2 : f32 to vector<1x1024xf32>
    %5 = arith.mulf %3, %4 : vector<1x1024xf32>
    %6 = arith.mulf %1, %1 : vector<32x1024xf32>
    %cst_3 = arith.constant dense<0.000000e+00> : vector<1024xf32>
    %7 = vector.multi_reduction <add>, %6, %cst_3 [0] : vector<32x1024xf32> to vector<1024xf32>
    %8 = vector.shape_cast %7 : vector<1024xf32> to vector<1x1024xf32>
    %cst_4 = arith.constant 3.125000e-02 : f32
    %9 = vector.broadcast %cst_4 : f32 to vector<1x1024xf32>
    %10 = arith.mulf %8, %9 : vector<1x1024xf32>
    %11 = arith.mulf %5, %5 : vector<1x1024xf32>
    %12 = arith.subf %10, %11 : vector<1x1024xf32>
    %cst_5 = arith.constant 0.000000e+00 : f32
    %13 = vector.broadcast %cst_5 : f32 to vector<1x1024xf32>
    %14 = arith.maximumf %12, %13 : vector<1x1024xf32>
    %cst_6 = arith.constant 9.99999974E-6 : f32
    %15 = vector.broadcast %cst_6 : f32 to vector<1x1024xf32>
    %16 = arith.addf %14, %15 : vector<1x1024xf32>
    %17 = math.rsqrt %16 : vector<1x1024xf32>
    %18 = vector.broadcast %5 : vector<1x1024xf32> to vector<32x1024xf32>
    %19 = arith.subf %1, %18 : vector<32x1024xf32>
    %20 = vector.broadcast %17 : vector<1x1024xf32> to vector<32x1024xf32>
    %21 = arith.mulf %19, %20 : vector<32x1024xf32>
    %c0_7 = arith.constant 0 : index
    %c0_8 = arith.constant 0 : index
    %22 = vector.load %arg3[%c0_7, %c0_8] : memref<32x1xf32, #tpu.memory_space<vmem>>, vector<32x1xf32>
    %23 = vector.broadcast %22 : vector<32x1xf32> to vector<32x1024xf32>
    %24 = arith.mulf %21, %23 : vector<32x1024xf32>
    %c0_9 = arith.constant 0 : index
    %c0_10 = arith.constant 0 : index
    %c0_11 = arith.constant 0 : index
    %25 = vector.load %arg4[%c0_9, %c0_10, %c0_11] : memref<1x32x1024xf32, #tpu.memory_space<vmem>>, vector<1x32x1024xf32>
    %26 = vector.shape_cast %25 : vector<1x32x1024xf32> to vector<32x1024xf32>
    %27 = vector.shape_cast %24 : vector<32x1024xf32> to vector<1x32x1024xf32>
    tpu.vector_store %arg4[%c0_9, %c0_10, %c0_11], %27 {strides = array<i32>} : memref<1x32x1024xf32, #tpu.memory_space<vmem>>, vector<1x32x1024xf32>,
    return
  }
  func.func @transform_0(%arg0: i32, %arg1: i32) -> (i32, i32, i32) {
    %c0_i32 = arith.constant 0 : i32
    %c0_i32_0 = arith.constant 0 : i32
    return %arg0, %c0_i32, %arg1 : i32, i32, i32
  }
  func.func @transform_1(%arg0: i32, %arg1: i32) -> (i32, i32) {
    %c0_i32 = arith.constant 0 : i32
    %c0_i32_0 = arith.constant 0 : i32
    %c0_i32_1 = arith.constant 0 : i32
    return %c0_i32, %c0_i32_0 : i32, i32
  }
  func.func @transform_2(%arg0: i32, %arg1: i32) -> (i32, i32, i32) {
    %c0_i32 = arith.constant 0 : i32
    %c0_i32_0 = arith.constant 0 : i32
    return %arg0, %c0_i32, %arg1 : i32, i32, i32
  }
}

</mosaic_0001>

<llo_original>
// kernel: layernorm.1
$region0: #{layernorm.1}
  #allocation0 [shape = 'u32[]', space=smem, size = 0x4, offset = 0x4, fixed_abs, tag = 'smem constant byte address 0x4 - core index']
  #allocation1 [shape = 'u32[72,128]{1,0:T(1,128)}', space=vmem, size = 0x9000, scoped, tag = 'internal scratch']
  %s0 = inlined_call_operand.vmem [shape: f32[2,32,1024], index: 0, kind: input, shape index: {}]
  %s1 = inlined_call_operand.vmem [shape: f32[32,1], index: 1, kind: input, shape index: {}]
  %s2 = inlined_call_operand.vmem [shape: f32[2,32,1024], index: 2, kind: output, shape index: {}]
  %s3 = sld [smem:[#allocation0]]
  $region41: #{layernorm.1} parent=0
    _
  %s5 = ssub.s32 1, %s3
  %s6 = scalar_select 0, %s5, %s3
  loop: start=0, step=1, limit=4
  $region2: #{layernorm.1} parent=0 // loop_pre_header
    _
  $region3: #{layernorm.1} parent=0 // loop_header
    %s8 = sphi 0, %s12
    %p9 = scmp.ge.s32.totalorder %s8, 4
    %s15 = sphi 0, %s27
    %s16 = sphi 0, %s23
    %s17 = sphi 0, %s15
    %s18 = sphi 0, %s16
    %s19 = sphi 0, %s17
    %s20 = sphi 0, %s18
    %s32 = sphi 0, %s34
    %s35 = sphi 0, %s32
    %s36 = sphi 0, %s35
    %s52 = sphi 0, %s36
    %s56 = sphi 0, %s56
    %s58 = sphi 0, %s56
    %s59 = sphi 0, %s58
    %s73 = sphi 0, %s59
    %s81 = sphi 0, %s83
    %s84 = sphi 0, %s81
    %s85 = sphi 0, %s84
    %s101 = sphi 0, %s85
  $region4: #{layernorm.1} parent=0 // loop_header_branch
    %11 = sbr.rel (%p9) target = $region8
  $region5: #{layernorm.1} parent=0 // loop_body
    %s13 = ssub.s32 %s8, 1
    %s14 = ssub.s32 %s8, 2
    %s21 = sadd.s32 1, %s16
    %p22 = scmp.ge.s32.totalorder %s21, 1
    %s23 = scalar_select %p22, 0, %s21
    %s24 = sadd.s32 1, %s15
    %s25 = scalar_select %p22, %s24, %s15
    %p26 = scmp.ge.s32.totalorder %s25, 2
    %s27 = scalar_select %p26, 0, %s25
    %s28 = ssub.s32 %s15, %s27
    %s29 = ssub.s32 %s16, %s23
    %s30 = sor.u32 %s28, %s29
    %p31 = scmp.eq.s32.totalorder %s30, 0
    %s33 = sadd.s32 %s32, 1
    %s34 = scalar_select %p31, %s32, %s33
    %p37 = pneg %p31
    %p38 = scmp.eq.s32.totalorder %s8, 1
    %p39 = por %p37, %p38
    %p40 = scmp.ne.s32.totalorder %s32, %s35
    %p41 = scmp.eq.s32.totalorder %s8, 0
    %p42 = por %p40, %p41
    %p43 = scmp.ne.s32.totalorder %s32, %s35
    %p44 = scmp.eq.s32.totalorder %s13, 1
    %p45 = por %p43, %p44
    %p46 = scmp.ne.s32.totalorder %s35, %s36
    %p47 = scmp.eq.s32.totalorder %s13, 0
    %p48 = por %p46, %p47
    %p49 = scmp.ne.s32.totalorder %s35, %s36
    %p50 = scmp.eq.s32.totalorder %s14, 1
    %p51 = por %p49, %p50
    %p53 = scmp.ne.s32.totalorder %s36, %s52
    %p54 = scmp.eq.s32.totalorder %s14, 0
    %p55 = por %p53, %p54
    %s57 = sadd.s32 %s56, 1
    %p60 = scmp.eq.s32.totalorder %s8, 1
    %p61 = scmp.ne.s32.totalorder %s56, %s58
    %p62 = scmp.eq.s32.totalorder %s8, 0
    %p63 = por %p61, %p62
    %p64 = scmp.ne.s32.totalorder %s56, %s58
    %p65 = scmp.eq.s32.totalorder %s13, 1
    %p66 = por %p64, %p65
    %p67 = scmp.ne.s32.totalorder %s58, %s59
    %p68 = scmp.eq.s32.totalorder %s13, 0
    %p69 = por %p67, %p68
    %p70 = scmp.ne.s32.totalorder %s58, %s59
    %p71 = scmp.eq.s32.totalorder %s14, 1
    %p72 = por %p70, %p71
    %p74 = scmp.ne.s32.totalorder %s59, %s73
    %p75 = scmp.eq.s32.totalorder %s14, 0
    %p76 = por %p74, %p75
    %s77 = ssub.s32 %s15, %s27
    %s78 = ssub.s32 %s16, %s23
    %s79 = sor.u32 %s77, %s78
    %p80 = scmp.eq.s32.totalorder %s79, 0
    %s82 = sadd.s32 %s81, 1
    %s83 = scalar_select %p80, %s81, %s82
    %p86 = pneg %p80
    %p87 = scmp.eq.s32.totalorder %s8, 1
    %p88 = por %p86, %p87
    %p89 = scmp.ne.s32.totalorder %s81, %s84
    %p90 = scmp.eq.s32.totalorder %s8, 0
    %p91 = por %p89, %p90
    %p92 = scmp.ne.s32.totalorder %s81, %s84
    %p93 = scmp.eq.s32.totalorder %s13, 1
    %p94 = por %p92, %p93
    %p95 = scmp.ne.s32.totalorder %s84, %s85
    %p96 = scmp.eq.s32.totalorder %s13, 0
    %p97 = por %p95, %p96
    %p98 = scmp.ne.s32.totalorder %s84, %s85
    %p99 = scmp.eq.s32.totalorder %s14, 1
    %p100 = por %p98, %p99
    %p102 = scmp.ne.s32.totalorder %s85, %s101
    %p103 = scmp.eq.s32.totalorder %s14, 0
    %p104 = por %p102, %p103
    %p105 = scmp.le.s32.totalorder 1, %s8
    %p106 = scmp.lt.s32.totalorder %s8, 3
    %p107 = pnand %p105, %p106
    %p108 = pneg %p107
    // Predicated region
    $region9: #{layernorm.1} parent=5 // pred_check
      _
    $region10: #{layernorm.1} parent=5 // pred_check_branch
      %110 = sbr.rel (%p107) target = $region12
    $region11: #{layernorm.1} parent=5 // pred_region
      %s111 = ssub.s32 %s8, 1
      // Predicated region
      $region13: #{layernorm.1} parent=11 // pred_check
        %p112 = pneg %p69
      $region14: #{layernorm.1} parent=11 // pred_check_branch
        %114 = sbr.rel (%p112) target = $region16
      $region15: #{layernorm.1} parent=11 // pred_region
        _
      $region16: #{layernorm.1} parent=11 // pred_fallthru
        _
    $region12: #{layernorm.1} parent=5 // pred_fallthru
      _
    %p115 = scmp.lt.s32.totalorder %s8, 2
    // Predicated region
    $region17: #{layernorm.1} parent=5 // pred_check
      %p116 = pneg %p115
    $region18: #{layernorm.1} parent=5 // pred_check_branch
      %118 = sbr.rel (%p116) target = $region20
    $region19: #{layernorm.1} parent=5 // pred_region
      // Predicated region
      $region21: #{layernorm.1} parent=19 // pred_check
        %p119 = pneg %p42
      $region22: #{layernorm.1} parent=19 // pred_check_branch
        %121 = sbr.rel (%p119) target = $region24
      $region23: #{layernorm.1} parent=19 // pred_region
        %s122 = smul.u32 8, %s16
        %p123 = scmp.lt.s32.totalorder %s15, 1
        %s124 = scalar_select %p123, %s15, 1
        %p125 = scmp.lt.s32.totalorder %s122, 7
        %s126 = scalar_select %p125, %s122, 7
        %s127 = smul.addr %s124, 32
        %s128 = sadd.s32 %s126, %s127
        %s129 = smul.addr %s128, 8
        %s130 = scalar_lea.vmem %s0, %s129
        %s131 = smul.u32 8, %s16
      $region24: #{layernorm.1} parent=19 // pred_fallthru
        _
    $region20: #{layernorm.1} parent=5 // pred_fallthru
      _
    %p132 = scmp.le.s32.totalorder 1, %s8
    %p133 = scmp.lt.s32.totalorder %s8, 3
    %p134 = pnand %p132, %p133
    %p135 = pneg %p134
    // Predicated region
    $region25: #{layernorm.1} parent=5 // pred_check
      _
    $region26: #{layernorm.1} parent=5 // pred_check_branch
      %137 = sbr.rel (%p134) target = $region28
    $region27: #{layernorm.1} parent=5 // pred_region
      %s138 = ssub.s32 %s8, 1
      %s139 = smul.u32 8, %s18
      %p140 = scmp.lt.s32.totalorder %s17, 1
      %s141 = scalar_select %p140, %s17, 1
      %p142 = scmp.lt.s32.totalorder %s139, 7
      %s143 = scalar_select %p142, %s139, 7
      %s144 = smul.addr %s141, 32
      %s145 = sadd.s32 %s143, %s144
      %s146 = smul.addr %s145, 8
      %s147 = scalar_lea.vmem %s0, %s146
      %p148 = pneg %p48
      %p149 = pneg %p45
      %p150 = pneg %p69
      %p151 = pneg %p66
      %p152 = pneg %p97
      %p153 = pneg %p94
      %s154 = smul.u32 8, %s18
      %p155 = scmp.lt.s32.totalorder %s17, 1
      %s156 = scalar_select %p155, %s17, 1
      %p157 = scmp.lt.s32.totalorder %s154, 7
      %s158 = scalar_select %p157, %s154, 7
      %s159 = smul.addr %s156, 32
      %s160 = sadd.s32 %s158, %s159
      %s161 = smul.addr %s160, 8
      %s162 = scalar_lea.vmem %s2, %s161
      %s163 = smul.u32 8, %s18
      %p164 = scmp.lt.s32.totalorder %s17, 1
      %s165 = scalar_select %p164, %s17, 1
      %p166 = scmp.lt.s32.totalorder %s163, 7
      %s167 = scalar_select %p166, %s163, 7
      %s168 = smul.addr %s165, 32
      %s169 = sadd.s32 %s167, %s168
      %s170 = smul.addr %s169, 8
      %s171 = scalar_lea.vmem %s0, %s170
      %s172 = smul.u32 8, %s18
      %s173 = smul.u32 8, %s18
      %p174 = scmp.lt.s32.totalorder %s17, 1
      %s175 = scalar_select %p174, %s17, 1
      %p176 = scmp.lt.s32.totalorder %s173, 7
      %s177 = scalar_select %p176, %s173, 7
      %s178 = smul.addr %s175, 32
      %s179 = sadd.s32 %s177, %s178
      %s180 = smul.addr %s179, 8
      %s181 = scalar_lea.vmem %s2, %s180
      %s182 = smul.u32 8, %s18
      %v183 = vld [vmem:[%s171] sm:$0xff]
      %v184 = vld [vmem:[%s171 + $0x8] sm:$0xff]
      %v185 = vld [vmem:[%s171 + $0x10] sm:$0xff]
      %v186 = vld [vmem:[%s171 + $0x18] sm:$0xff]
      %v187 = vld [vmem:[%s171 + $0x20] sm:$0xff]
      %v188 = vld [vmem:[%s171 + $0x28] sm:$0xff]
      %v189 = vld [vmem:[%s171 + $0x30] sm:$0xff]
      %v190 = vld [vmem:[%s171 + $0x38] sm:$0xff]
      %v191 = vld [vmem:[%s171 + $0x40] sm:$0xff]
      %v192 = vld [vmem:[%s171 + $0x48] sm:$0xff]
      %v193 = vld [vmem:[%s171 + $0x50] sm:$0xff]
      %v194 = vld [vmem:[%s171 + $0x58] sm:$0xff]
      %v195 = vld [vmem:[%s171 + $0x60] sm:$0xff]
      %v196 = vld [vmem:[%s171 + $0x68] sm:$0xff]
      %v197 = vld [vmem:[%s171 + $0x70] sm:$0xff]
      %v198 = vld [vmem:[%s171 + $0x78] sm:$0xff]
      %v199 = vld [vmem:[%s171 + $0x80] sm:$0xff]
      %v200 = vld [vmem:[%s171 + $0x88] sm:$0xff]
      %v201 = vld [vmem:[%s171 + $0x90] sm:$0xff]
      %v202 = vld [vmem:[%s171 + $0x98] sm:$0xff]
      %v203 = vld [vmem:[%s171 + $0xa0] sm:$0xff]
      %v204 = vld [vmem:[%s171 + $0xa8] sm:$0xff]
      %v205 = vld [vmem:[%s171 + $0xb0] sm:$0xff]
      %v206 = vld [vmem:[%s171 + $0xb8] sm:$0xff]
      %v207 = vld [vmem:[%s171 + $0xc0] sm:$0xff]
      %v208 = vld [vmem:[%s171 + $0xc8] sm:$0xff]
      %v209 = vld [vmem:[%s171 + $0xd0] sm:$0xff]
      %v210 = vld [vmem:[%s171 + $0xd8] sm:$0xff]
      %v211 = vld [vmem:[%s171 + $0xe0] sm:$0xff]
      %v212 = vld [vmem:[%s171 + $0xe8] sm:$0xff]
      %v213 = vld [vmem:[%s171 + $0xf0] sm:$0xff]
      %v214 = vld [vmem:[%s171 + $0xf8] sm:$0xff]
      %v215 = vadd.f32 %v183, %v191
      %v216 = vadd.f32 %v215, %v199
      %v217 = vadd.f32 %v216, %v207
      %v218 = vrot.slane %v217, 4
      %v219 = vadd.f32 %v217, %v218
      %v220 = vrot.slane %v219, 2
      %v221 = vadd.f32 %v219, %v220
      %v222 = vrot.slane %v221, 1
      %v223 = vadd.f32 %v221, %v222
      %v224 = vadd.f32 %v184, %v192
      %v225 = vadd.f32 %v224, %v200
      %v226 = vadd.f32 %v225, %v208
      %v227 = vrot.slane %v226, 4
      %v228 = vadd.f32 %v226, %v227
      %v229 = vrot.slane %v228, 2
      %v230 = vadd.f32 %v228, %v229
      %v231 = vrot.slane %v230, 1
      %v232 = vadd.f32 %v230, %v231
      %v233 = vadd.f32 %v185, %v193
      %v234 = vadd.f32 %v233, %v201
      %v235 = vadd.f32 %v234, %v209
      %v236 = vrot.slane %v235, 4
      %v237 = vadd.f32 %v235, %v236
      %v238 = vrot.slane %v237, 2
      %v239 = vadd.f32 %v237, %v238
      %v240 = vrot.slane %v239, 1
      %v241 = vadd.f32 %v239, %v240
      %v242 = vadd.f32 %v186, %v194
      %v243 = vadd.f32 %v242, %v202
      %v244 = vadd.f32 %v243, %v210
      %v245 = vrot.slane %v244, 4
      %v246 = vadd.f32 %v244, %v245
      %v247 = vrot.slane %v246, 2
      %v248 = vadd.f32 %v246, %v247
      %v249 = vrot.slane %v248, 1
      %v250 = vadd.f32 %v248, %v249
      %v251 = vadd.f32 %v187, %v195
      %v252 = vadd.f32 %v251, %v203
      %v253 = vadd.f32 %v252, %v211
      %v254 = vrot.slane %v253, 4
      %v255 = vadd.f32 %v253, %v254
      %v256 = vrot.slane %v255, 2
      %v257 = vadd.f32 %v255, %v256
      %v258 = vrot.slane %v257, 1
      %v259 = vadd.f32 %v257, %v258
      %v260 = vadd.f32 %v188, %v196
      %v261 = vadd.f32 %v260, %v204
      %v262 = vadd.f32 %v261, %v212
      %v263 = vrot.slane %v262, 4
      %v264 = vadd.f32 %v262, %v263
      %v265 = vrot.slane %v264, 2
      %v266 = vadd.f32 %v264, %v265
      %v267 = vrot.slane %v266, 1
      %v268 = vadd.f32 %v266, %v267
      %v269 = vadd.f32 %v189, %v197
      %v270 = vadd.f32 %v269, %v205
      %v271 = vadd.f32 %v270, %v213
      %v272 = vrot.slane %v271, 4
      %v273 = vadd.f32 %v271, %v272
      %v274 = vrot.slane %v273, 2
      %v275 = vadd.f32 %v273, %v274
      %v276 = vrot.slane %v275, 1
      %v277 = vadd.f32 %v275, %v276
      %v278 = vadd.f32 %v190, %v198
      %v279 = vadd.f32 %v278, %v206
      %v280 = vadd.f32 %v279, %v214
      %v281 = vrot.slane %v280, 4
      %v282 = vadd.f32 %v280, %v281
      %v283 = vrot.slane %v282, 2
      %v284 = vadd.f32 %v282, %v283
      %v285 = vrot.slane %v284, 1
      %v286 = vadd.f32 %v284, %v285
      %v287 = vmul.f32 %v223, 0.03125
      %v288 = vmul.f32 %v232, 0.03125
      %v289 = vmul.f32 %v241, 0.03125
      %v290 = vmul.f32 %v250, 0.03125
      %v291 = vmul.f32 %v259, 0.03125
      %v292 = vmul.f32 %v268, 0.03125
      %v293 = vmul.f32 %v277, 0.03125
      %v294 = vmul.f32 %v286, 0.03125
      %v295 = vmul.f32 %v183, %v183
      %v296 = vmul.f32 %v184, %v184
      %v297 = vmul.f32 %v185, %v185
      %v298 = vmul.f32 %v186, %v186
      %v299 = vmul.f32 %v187, %v187
      %v300 = vmul.f32 %v188, %v188
      %v301 = vmul.f32 %v189, %v189
      %v302 = vmul.f32 %v190, %v190
      %v303 = vmul.f32 %v191, %v191
      %v304 = vmul.f32 %v192, %v192
      %v305 = vmul.f32 %v193, %v193
      %v306 = vmul.f32 %v194, %v194
      %v307 = vmul.f32 %v195, %v195
      %v308 = vmul.f32 %v196, %v196
      %v309 = vmul.f32 %v197, %v197
      %v310 = vmul.f32 %v198, %v198
      %v311 = vmul.f32 %v199, %v199
      %v312 = vmul.f32 %v200, %v200
      %v313 = vmul.f32 %v201, %v201
      %v314 = vmul.f32 %v202, %v202
      %v315 = vmul.f32 %v203, %v203
      %v316 = vmul.f32 %v204, %v204
      %v317 = vmul.f32 %v205, %v205
      %v318 = vmul.f32 %v206, %v206
      %v319 = vmul.f32 %v207, %v207
      %v320 = vmul.f32 %v208, %v208
      %v321 = vmul.f32 %v209, %v209
      %v322 = vmul.f32 %v210, %v210
      %v323 = vmul.f32 %v211, %v211
      %v324 = vmul.f32 %v212, %v212
      %v325 = vmul.f32 %v213, %v213
      %v326 = vmul.f32 %v214, %v214
      %v327 = vadd.f32 %v295, %v303
      %v328 = vadd.f32 %v327, %v311
      %v329 = vadd.f32 %v328, %v319
      %v330 = vrot.slane %v329, 4
      %v331 = vadd.f32 %v329, %v330
      %v332 = vrot.slane %v331, 2
      %v333 = vadd.f32 %v331, %v332
      %v334 = vrot.slane %v333, 1
      %v335 = vadd.f32 %v333, %v334
      %v336 = vadd.f32 %v296, %v304
      %v337 = vadd.f32 %v336, %v312
      %v338 = vadd.f32 %v337, %v320
      %v339 = vrot.slane %v338, 4
      %v340 = vadd.f32 %v338, %v339
      %v341 = vrot.slane %v340, 2
      %v342 = vadd.f32 %v340, %v341
      %v343 = vrot.slane %v342, 1
      %v344 = vadd.f32 %v342, %v343
      %v345 = vadd.f32 %v297, %v305
      %v346 = vadd.f32 %v345, %v313
      %v347 = vadd.f32 %v346, %v321
      %v348 = vrot.slane %v347, 4
      %v349 = vadd.f32 %v347, %v348
      %v350 = vrot.slane %v349, 2
      %v351 = vadd.f32 %v349, %v350
      %v352 = vrot.slane %v351, 1
      %v353 = vadd.f32 %v351, %v352
      %v354 = vadd.f32 %v298, %v306
      %v355 = vadd.f32 %v354, %v314
      %v356 = vadd.f32 %v355, %v322
      %v357 = vrot.slane %v356, 4
      %v358 = vadd.f32 %v356, %v357
      %v359 = vrot.slane %v358, 2
      %v360 = vadd.f32 %v358, %v359
      %v361 = vrot.slane %v360, 1
      %v362 = vadd.f32 %v360, %v361
      %v363 = vadd.f32 %v299, %v307
      %v364 = vadd.f32 %v363, %v315
      %v365 = vadd.f32 %v364, %v323
      %v366 = vrot.slane %v365, 4
      %v367 = vadd.f32 %v365, %v366
      %v368 = vrot.slane %v367, 2
      %v369 = vadd.f32 %v367, %v368
      %v370 = vrot.slane %v369, 1
      %v371 = vadd.f32 %v369, %v370
      %v372 = vadd.f32 %v300, %v308
      %v373 = vadd.f32 %v372, %v316
      %v374 = vadd.f32 %v373, %v324
      %v375 = vrot.slane %v374, 4
      %v376 = vadd.f32 %v374, %v375
      %v377 = vrot.slane %v376, 2
      %v378 = vadd.f32 %v376, %v377
      %v379 = vrot.slane %v378, 1
      %v380 = vadd.f32 %v378, %v379
      %v381 = vadd.f32 %v301, %v309
      %v382 = vadd.f32 %v381, %v317
      %v383 = vadd.f32 %v382, %v325
      %v384 = vrot.slane %v383, 4
      %v385 = vadd.f32 %v383, %v384
      %v386 = vrot.slane %v385, 2
      %v387 = vadd.f32 %v385, %v386
      %v388 = vrot.slane %v387, 1
      %v389 = vadd.f32 %v387, %v388
      %v390 = vadd.f32 %v302, %v310
      %v391 = vadd.f32 %v390, %v318
      %v392 = vadd.f32 %v391, %v326
      %v393 = vrot.slane %v392, 4
      %v394 = vadd.f32 %v392, %v393
      %v395 = vrot.slane %v394, 2
      %v396 = vadd.f32 %v394, %v395
      %v397 = vrot.slane %v396, 1
      %v398 = vadd.f32 %v396, %v397
      %v399 = vmul.f32 %v335, 0.03125
      %v400 = vmul.f32 %v344, 0.03125
      %v401 = vmul.f32 %v353, 0.03125
      %v402 = vmul.f32 %v362, 0.03125
      %v403 = vmul.f32 %v371, 0.03125
      %v404 = vmul.f32 %v380, 0.03125
      %v405 = vmul.f32 %v389, 0.03125
      %v406 = vmul.f32 %v398, 0.03125
      %v407 = vmul.f32 %v287, %v287
      %v408 = vmul.f32 %v288, %v288
      %v409 = vmul.f32 %v289, %v289
      %v410 = vmul.f32 %v290, %v290
      %v411 = vmul.f32 %v291, %v291
      %v412 = vmul.f32 %v292, %v292
      %v413 = vmul.f32 %v293, %v293
      %v414 = vmul.f32 %v294, %v294
      %v415 = vsub.f32 %v399, %v407
      %v416 = vsub.f32 %v400, %v408
      %v417 = vsub.f32 %v401, %v409
      %v418 = vsub.f32 %v402, %v410
      %v419 = vsub.f32 %v403, %v411
      %v420 = vsub.f32 %v404, %v412
      %v421 = vsub.f32 %v405, %v413
      %v422 = vsub.f32 %v406, %v414
      %v423 = vmax.f32 %v415, 0.0
      %v424 = vmax.f32 %v416, 0.0
      %v425 = vmax.f32 %v417, 0.0
      %v426 = vmax.f32 %v418, 0.0
      %v427 = vmax.f32 %v419, 0.0
      %v428 = vmax.f32 %v420, 0.0
      %v429 = vmax.f32 %v421, 0.0
      %v430 = vmax.f32 %v422, 0.0
      %v431 = vadd.f32 %v423, 1e-05
      %v432 = vadd.f32 %v424, 1e-05
      %v433 = vadd.f32 %v425, 1e-05
      %v434 = vadd.f32 %v426, 1e-05
      %v435 = vadd.f32 %v427, 1e-05
      %v436 = vadd.f32 %v428, 1e-05
      %v437 = vadd.f32 %v429, 1e-05
      %v438 = vadd.f32 %v430, 1e-05
      %v439 = vrsqrt.pop %v431
      %v440 = vmul.f32 %v439, %v431
      %v441 = vmul.f32 %v440, %v439
      %v442 = vmul.f32 0.5, %v441
      %v443 = vsub.f32 1.5, %v442
      %v444 = vmul.f32 %v439, %v443
      %vm445 = vweird.f32 %v431
      %vm446 = vweird.f32 %v439
      %vm447 = vmor %vm445, %vm446
      %v448 = vsel %vm447, %v439, %v444
      %v449 = vrsqrt.pop %v432
      %v450 = vmul.f32 %v449, %v432
      %v451 = vmul.f32 %v450, %v449
      %v452 = vmul.f32 0.5, %v451
      %v453 = vsub.f32 1.5, %v452
      %v454 = vmul.f32 %v449, %v453
      %vm455 = vweird.f32 %v432
      %vm456 = vweird.f32 %v449
      %vm457 = vmor %vm455, %vm456
      %v458 = vsel %vm457, %v449, %v454
      %v459 = vrsqrt.pop %v433
      %v460 = vmul.f32 %v459, %v433
      %v461 = vmul.f32 %v460, %v459
      %v462 = vmul.f32 0.5, %v461
      %v463 = vsub.f32 1.5, %v462
      %v464 = vmul.f32 %v459, %v463
      %vm465 = vweird.f32 %v433
      %vm466 = vweird.f32 %v459
      %vm467 = vmor %vm465, %vm466
      %v468 = vsel %vm467, %v459, %v464
      %v469 = vrsqrt.pop %v434
      %v470 = vmul.f32 %v469, %v434
      %v471 = vmul.f32 %v470, %v469
      %v472 = vmul.f32 0.5, %v471
      %v473 = vsub.f32 1.5, %v472
      %v474 = vmul.f32 %v469, %v473
      %vm475 = vweird.f32 %v434
      %vm476 = vweird.f32 %v469
      %vm477 = vmor %vm475, %vm476
      %v478 = vsel %vm477, %v469, %v474
      %v479 = vrsqrt.pop %v435
      %v480 = vmul.f32 %v479, %v435
      %v481 = vmul.f32 %v480, %v479
      %v482 = vmul.f32 0.5, %v481
      %v483 = vsub.f32 1.5, %v482
      %v484 = vmul.f32 %v479, %v483
      %vm485 = vweird.f32 %v435
      %vm486 = vweird.f32 %v479
      %vm487 = vmor %vm485, %vm486
      %v488 = vsel %vm487, %v479, %v484
      %v489 = vrsqrt.pop %v436
      %v490 = vmul.f32 %v489, %v436
      %v491 = vmul.f32 %v490, %v489
      %v492 = vmul.f32 0.5, %v491
      %v493 = vsub.f32 1.5, %v492
      %v494 = vmul.f32 %v489, %v493
      %vm495 = vweird.f32 %v436
      %vm496 = vweird.f32 %v489
      %vm497 = vmor %vm495, %vm496
      %v498 = vsel %vm497, %v489, %v494
      %v499 = vrsqrt.pop %v437
      %v500 = vmul.f32 %v499, %v437
      %v501 = vmul.f32 %v500, %v499
      %v502 = vmul.f32 0.5, %v501
      %v503 = vsub.f32 1.5, %v502
      %v504 = vmul.f32 %v499, %v503
      %vm505 = vweird.f32 %v437
      %vm506 = vweird.f32 %v499
      %vm507 = vmor %vm505, %vm506
      %v508 = vsel %vm507, %v499, %v504
      %v509 = vrsqrt.pop %v438
      %v510 = vmul.f32 %v509, %v438
      %v511 = vmul.f32 %v510, %v509
      %v512 = vmul.f32 0.5, %v511
      %v513 = vsub.f32 1.5, %v512
      %v514 = vmul.f32 %v509, %v513
      %vm515 = vweird.f32 %v438
      %vm516 = vweird.f32 %v509
      %vm517 = vmor %vm515, %vm516
      %v518 = vsel %vm517, %v509, %v514
      %v519 = vsub.f32 %v183, %v287
      %v520 = vsub.f32 %v184, %v288
      %v521 = vsub.f32 %v185, %v289
      %v522 = vsub.f32 %v186, %v290
      %v523 = vsub.f32 %v187, %v291
      %v524 = vsub.f32 %v188, %v292
      %v525 = vsub.f32 %v189, %v293
      %v526 = vsub.f32 %v190, %v294
      %v527 = vsub.f32 %v191, %v287
      %v528 = vsub.f32 %v192, %v288
      %v529 = vsub.f32 %v193, %v289
      %v530 = vsub.f32 %v194, %v290
      %v531 = vsub.f32 %v195, %v291
      %v532 = vsub.f32 %v196, %v292
      %v533 = vsub.f32 %v197, %v293
      %v534 = vsub.f32 %v198, %v294
      %v535 = vsub.f32 %v199, %v287
      %v536 = vsub.f32 %v200, %v288
      %v537 = vsub.f32 %v201, %v289
      %v538 = vsub.f32 %v202, %v290
      %v539 = vsub.f32 %v203, %v291
      %v540 = vsub.f32 %v204, %v292
      %v541 = vsub.f32 %v205, %v293
      %v542 = vsub.f32 %v206, %v294
      %v543 = vsub.f32 %v207, %v287
      %v544 = vsub.f32 %v208, %v288
      %v545 = vsub.f32 %v209, %v289
      %v546 = vsub.f32 %v210, %v290
      %v547 = vsub.f32 %v211, %v291
      %v548 = vsub.f32 %v212, %v292
      %v549 = vsub.f32 %v213, %v293
      %v550 = vsub.f32 %v214, %v294
      %v551 = vmul.f32 %v519, %v448
      %v552 = vmul.f32 %v520, %v458
      %v553 = vmul.f32 %v521, %v468
      %v554 = vmul.f32 %v522, %v478
      %v555 = vmul.f32 %v523, %v488
      %v556 = vmul.f32 %v524, %v498
      %v557 = vmul.f32 %v525, %v508
      %v558 = vmul.f32 %v526, %v518
      %v559 = vmul.f32 %v527, %v448
      %v560 = vmul.f32 %v528, %v458
      %v561 = vmul.f32 %v529, %v468
      %v562 = vmul.f32 %v530, %v478
      %v563 = vmul.f32 %v531, %v488
      %v564 = vmul.f32 %v532, %v498
      %v565 = vmul.f32 %v533, %v508
      %v566 = vmul.f32 %v534, %v518
      %v567 = vmul.f32 %v535, %v448
      %v568 = vmul.f32 %v536, %v458
      %v569 = vmul.f32 %v537, %v468
      %v570 = vmul.f32 %v538, %v478
      %v571 = vmul.f32 %v539, %v488
      %v572 = vmul.f32 %v540, %v498
      %v573 = vmul.f32 %v541, %v508
      %v574 = vmul.f32 %v542, %v518
      %v575 = vmul.f32 %v543, %v448
      %v576 = vmul.f32 %v544, %v458
      %v577 = vmul.f32 %v545, %v468
      %v578 = vmul.f32 %v546, %v478
      %v579 = vmul.f32 %v547, %v488
      %v580 = vmul.f32 %v548, %v498
      %v581 = vmul.f32 %v549, %v508
      %v582 = vmul.f32 %v550, %v518
      %v583 = vld [vmem:[%s1] sm:$0xff]
      %v584 = vld [vmem:[%s1 + $0x8] sm:$0xff]
      %v585 = vld [vmem:[%s1 + $0x10] sm:$0xff]
      %v586 = vld [vmem:[%s1 + $0x18] sm:$0xff]
      %588 = vset.pattern.permute.xlu0 0
      %589 = vperm.xlu0 %588, %v583
      %v590 = vpop.permute.xlu0 %589
      %593 = vset.pattern.permute.xlu0 0
      %594 = vperm.xlu0 %593, %v584
      %v595 = vpop.permute.xlu0 %594
      %598 = vset.pattern.permute.xlu0 0
      %599 = vperm.xlu0 %598, %v585
      %v600 = vpop.permute.xlu0 %599
      %603 = vset.pattern.permute.xlu0 0
      %604 = vperm.xlu0 %603, %v586
      %v605 = vpop.permute.xlu0 %604
      %v607 = vmul.f32 %v551, %v590
      %v608 = vmul.f32 %v552, %v590
      %v609 = vmul.f32 %v553, %v590
      %v610 = vmul.f32 %v554, %v590
      %v611 = vmul.f32 %v555, %v590
      %v612 = vmul.f32 %v556, %v590
      %v613 = vmul.f32 %v557, %v590
      %v614 = vmul.f32 %v558, %v590
      %v615 = vmul.f32 %v559, %v595
      %v616 = vmul.f32 %v560, %v595
      %v617 = vmul.f32 %v561, %v595
      %v618 = vmul.f32 %v562, %v595
      %v619 = vmul.f32 %v563, %v595
      %v620 = vmul.f32 %v564, %v595
      %v621 = vmul.f32 %v565, %v595
      %v622 = vmul.f32 %v566, %v595
      %v623 = vmul.f32 %v567, %v600
      %v624 = vmul.f32 %v568, %v600
      %v625 = vmul.f32 %v569, %v600
      %v626 = vmul.f32 %v570, %v600
      %v627 = vmul.f32 %v571, %v600
      %v628 = vmul.f32 %v572, %v600
      %v629 = vmul.f32 %v573, %v600
      %v630 = vmul.f32 %v574, %v600
      %v631 = vmul.f32 %v575, %v605
      %v632 = vmul.f32 %v576, %v605
      %v633 = vmul.f32 %v577, %v605
      %v634 = vmul.f32 %v578, %v605
      %v635 = vmul.f32 %v579, %v605
      %v636 = vmul.f32 %v580, %v605
      %v637 = vmul.f32 %v581, %v605
      %v638 = vmul.f32 %v582, %v605
      %639 = vst [vmem:[%s181] sm:$0xff] %v607
      %640 = vst [vmem:[%s181 + $0x8] sm:$0xff] %v608
      %641 = vst [vmem:[%s181 + $0x10] sm:$0xff] %v609
      %642 = vst [vmem:[%s181 + $0x18] sm:$0xff] %v610
      %643 = vst [vmem:[%s181 + $0x20] sm:$0xff] %v611
      %644 = vst [vmem:[%s181 + $0x28] sm:$0xff] %v612
      %645 = vst [vmem:[%s181 + $0x30] sm:$0xff] %v613
      %646 = vst [vmem:[%s181 + $0x38] sm:$0xff] %v614
      %647 = vst [vmem:[%s181 + $0x40] sm:$0xff] %v615
      %648 = vst [vmem:[%s181 + $0x48] sm:$0xff] %v616
      %649 = vst [vmem:[%s181 + $0x50] sm:$0xff] %v617
      %650 = vst [vmem:[%s181 + $0x58] sm:$0xff] %v618
      %651 = vst [vmem:[%s181 + $0x60] sm:$0xff] %v619
      %652 = vst [vmem:[%s181 + $0x68] sm:$0xff] %v620
      %653 = vst [vmem:[%s181 + $0x70] sm:$0xff] %v621
      %654 = vst [vmem:[%s181 + $0x78] sm:$0xff] %v622
      %655 = vst [vmem:[%s181 + $0x80] sm:$0xff] %v623
      %656 = vst [vmem:[%s181 + $0x88] sm:$0xff] %v624
      %657 = vst [vmem:[%s181 + $0x90] sm:$0xff] %v625
      %658 = vst [vmem:[%s181 + $0x98] sm:$0xff] %v626
      %659 = vst [vmem:[%s181 + $0xa0] sm:$0xff] %v627
      %660 = vst [vmem:[%s181 + $0xa8] sm:$0xff] %v628
      %661 = vst [vmem:[%s181 + $0xb0] sm:$0xff] %v629
      %662 = vst [vmem:[%s181 + $0xb8] sm:$0xff] %v630
      %663 = vst [vmem:[%s181 + $0xc0] sm:$0xff] %v631
      %664 = vst [vmem:[%s181 + $0xc8] sm:$0xff] %v632
      %665 = vst [vmem:[%s181 + $0xd0] sm:$0xff] %v633
      %666 = vst [vmem:[%s181 + $0xd8] sm:$0xff] %v634
      %667 = vst [vmem:[%s181 + $0xe0] sm:$0xff] %v635
      %668 = vst [vmem:[%s181 + $0xe8] sm:$0xff] %v636
      %669 = vst [vmem:[%s181 + $0xf0] sm:$0xff] %v637
      %670 = vst [vmem:[%s181 + $0xf8] sm:$0xff] %v638
      %s671 = smul.u32 8, %s18
      %p672 = scmp.lt.s32.totalorder %s17, 1
      %s673 = scalar_select %p672, %s17, 1
      %p674 = scmp.lt.s32.totalorder %s671, 7
      %s675 = scalar_select %p674, %s671, 7
      %s676 = smul.addr %s673, 32
      %s677 = sadd.s32 %s675, %s676
      %s678 = smul.addr %s677, 8
      %s679 = scalar_lea.vmem %s2, %s678
      // Predicated region
      $region29: #{layernorm.1} parent=27 // pred_check
        %p680 = pneg %p94
      $region30: #{layernorm.1} parent=27 // pred_check_branch
        %682 = sbr.rel (%p680) target = $region32
      $region31: #{layernorm.1} parent=27 // pred_region
        %s683 = smul.u32 8, %s18
      $region32: #{layernorm.1} parent=27 // pred_fallthru
        _
    $region28: #{layernorm.1} parent=5 // pred_fallthru
      _
    %p684 = scmp.le.s32.totalorder 2, %s8
    // Predicated region
    $region33: #{layernorm.1} parent=5 // pred_check
      %p685 = pneg %p684
    $region34: #{layernorm.1} parent=5 // pred_check_branch
      %687 = sbr.rel (%p685) target = $region36
    $region35: #{layernorm.1} parent=5 // pred_region
      %s688 = ssub.s32 %s8, 2
      // Predicated region
      $region37: #{layernorm.1} parent=35 // pred_check
        %p689 = pneg %p100
      $region38: #{layernorm.1} parent=35 // pred_check_branch
        %691 = sbr.rel (%p689) target = $region40
      $region39: #{layernorm.1} parent=35 // pred_region
        %s692 = smul.u32 8, %s20
        %p693 = scmp.lt.s32.totalorder %s19, 1
        %s694 = scalar_select %p693, %s19, 1
        %p695 = scmp.lt.s32.totalorder %s692, 7
        %s696 = scalar_select %p695, %s692, 7
        %s697 = smul.addr %s694, 32
        %s698 = sadd.s32 %s696, %s697
        %s699 = smul.addr %s698, 8
        %s700 = scalar_lea.vmem %s2, %s699
      $region40: #{layernorm.1} parent=35 // pred_fallthru
        _
    $region36: #{layernorm.1} parent=5 // pred_fallthru
      _
  $region6: #{layernorm.1} parent=0 // loop_footer
    %s12 = sadd.s32 1, %s8
  $region7: #{layernorm.1} parent=0 // loop_footer_branch
    %7 = sbr.rel target = $region3
  $region8: #{layernorm.1} parent=0 // loop_exit
    _

</llo_original>
